<compile_context>
chip_gen: v6e
topology: v6e:2x2x1
jax: 0.10.0
libtpu: 0.0.40
codegen_flags: <defaults>
</compile_context>

<pallas_src>
import jax
import jax.numpy as jnp
from jax import lax
from jax.experimental import pallas as pl
from jax.experimental.pallas import tpu as pltpu

_NEG_INF = -9.0e15          # same constant as the PyTorch module
_NORM_EPS = 1e-30           # avoid NaN/Inf for all-zero similarity rows


def _graph_conv_kernel(x_ref, adj_ref, w_ref, b_ref, o_ref):
    bt, n, fp = x_ref.shape          # (batch tile, nodes, padded features)

    # bf16 operands for the MXU, f32 accumulation everywhere.
    x_b = x_ref[...].astype(jnp.bfloat16)            # (bt, N, Fp)
    w_b = w_ref[...].astype(jnp.bfloat16)            # (Fp, Fp)
    adj = adj_ref[...]                                # (bt, N, N) f32
    bias = b_ref[...]                                 # (1, Fp)    f32

    # ---- XW = X @ W : flatten the fused batch into one tall MXU matmul ----
    xw = jnp.dot(x_b.reshape(bt * n, fp), w_b,
                 preferred_element_type=jnp.float32)  # (bt*N, Fp) f32
    xw_b = xw.reshape(bt, n, fp).astype(jnp.bfloat16)

    # ---- A = XW @ XWᵀ : contract last dims directly (no transpose) --------
    a = lax.dot_general(
        xw_b, xw_b,
        dimension_numbers=(((2,), (2,)), ((0,), (0,))),
        preferred_element_type=jnp.float32)           # (bt, N, N) f32

    # ---- cosine normalization: A / (|A|_row |A|_rowᵀ) via rsqrt ------------
    sq = a * a
    inv_r = lax.rsqrt(jnp.sum(sq, axis=2, keepdims=True) + _NORM_EPS)  # (bt,N,1)
    # A is symmetric, so the per-column norms equal the per-row norms; an
    # axis=1 reduction gives them already oriented (bt,1,N) — no transpose.
    inv_c = lax.rsqrt(jnp.sum(sq, axis=1, keepdims=True) + _NORM_EPS)  # (bt,1,N)
    a = a * inv_r * inv_c

    # ---- LeakyReLU(negative_slope = -0.2): max(a, -0.2*a) ------------------
    # (x>=0 -> x ;  x<0 -> -0.2*x, which is positive — exactly the module.)
    e = jnp.maximum(a, -0.2 * a)

    # ---- masked softmax over the last dim ----------------------------------
    # Max-subtraction kept so an all-masked row degrades to a uniform softmax,
    # exactly like torch.nn.functional.softmax.
    logits = jnp.where(adj > 0.0, e, _NEG_INF)
    logits = logits - jnp.max(logits, axis=-1, keepdims=True)
    p = jnp.exp(logits)
    denom = jnp.sum(p, axis=-1, keepdims=True)
    att = p * pl.reciprocal(denom, approx=True)       # EUP vrcp, ~free slot

    # ---- h = att @ X (bf16 inputs, f32 accumulation) ------------------------
    h = lax.dot_general(
        att.astype(jnp.bfloat16), x_b,
        dimension_numbers=(((2,), (1,)), ((0,), (0,))),
        preferred_element_type=jnp.float32)           # (bt, N, Fp)

    h = h + bias                                      # (1,Fp) broadcasts
    # ELU
    o_ref[...] = jnp.where(h > 0.0, h, jnp.exp(h) - 1.0).astype(o_ref.dtype)


def graph_convolution(x, adj, w_a, bias, *, batch_tile=None):
    """Forward pass of the GraphConvolution module (cosine similarity branch)."""
    B, N, F = x.shape
    F_in, F_out = w_a.shape
    assert F == F_in and F_in == F_out, \
        "bias broadcast requires in_features == out_features"
    assert adj.shape == (B, N, N)

    x = x.astype(jnp.float32)
    adj = adj.astype(jnp.float32)
    w_a = w_a.astype(jnp.float32)
    bias = bias.astype(jnp.float32)

    # ---- 1) lane-dense feature dim: pad F up to a multiple of 128 ----------
    # (unmasked vst on the output, full MXU tiles; zero padding keeps the
    #  math identical and is sliced off afterwards)
    LANE = 128
    Fp = ((F + LANE - 1) // LANE) * LANE
    if Fp != F:
        pad = Fp - F
        x_p = jnp.pad(x, ((0, 0), (0, 0), (0, pad)))
        w_p = jnp.pad(w_a, ((0, pad), (0, pad)))
        b_p = jnp.pad(bias, ((0, 0), (0, pad)))
    else:
        x_p, w_p, b_p = x, w_a, bias

    # ---- 2) fuse batch elements per grid step (amortize ~0.35 µs/step) -----
    if batch_tile is None:
        batch_tile = min(B, max(1, 256 // max(N, 1)))
    bt = max(1, min(int(batch_tile), B))

    # Keep the (double-buffered) per-step working set comfortably inside VMEM.
    def _block_bytes(bt_):
        # x tile + out tile + adj tile (all f32) ; weight + bias resident
        return 4 * (2 * bt_ * N * Fp + bt_ * N * N) + 4 * (Fp * Fp + Fp)

    while bt > 1 and 2 * _block_bytes(bt) > (24 << 20):
        bt -= 1
    while B % bt:                 # keep it a divisor of B (no batch padding)
        bt -= 1
    grid = (B // bt,)

    # ---- 3) explicit VMEM budget (raise v5e's 16 MiB, stay under v7x 64) ---
    vmem_limit = int(min(max(2 * _block_bytes(bt) + (16 << 20), 32 << 20),
                         64 << 20))

    out = pl.pallas_call(
        _graph_conv_kernel,
        out_shape=jax.ShapeDtypeStruct((B, N, Fp), jnp.float32),
        grid_spec=pltpu.PrefetchScalarGridSpec(
            num_scalar_prefetch=0,
            grid=grid,
            in_specs=[
                pl.BlockSpec((bt, N, Fp), lambda i: (i, 0, 0)),   # x
                pl.BlockSpec((bt, N, N), lambda i: (i, 0, 0)),    # adj
                pl.BlockSpec((Fp, Fp), lambda i: (0, 0)),         # W_a (resident)
                pl.BlockSpec((1, Fp), lambda i: (0, 0)),          # bias (resident)
            ],
            out_specs=pl.BlockSpec((bt, N, Fp), lambda i: (i, 0, 0)),
        ),
        compiler_params=pltpu.CompilerParams(
            dimension_semantics=("parallel",),
            vmem_limit_bytes=vmem_limit,
        ),
    )(x_p, adj, w_p, b_p)

    return out[:, :, :F] if Fp != F else out


def _reference(x, adj, w_a, bias):
    """Pure-JAX f32 reference, faithful to the PyTorch forward."""
    xw = jnp.einsum("bnf,fo->bno", x, w_a)
    a = jnp.einsum("bno,bmo->bnm", xw, xw)
    mag = jnp.sqrt(jnp.sum(a * a, axis=-1, keepdims=True))
    a = a / (mag * jnp.swapaxes(mag, 1, 2))
    e = jnp.where(a >= 0.0, a, -0.2 * a)
    att = jnp.where(adj > 0.0, e, _NEG_INF)
    att = jax.nn.softmax(att, axis=-1)
    h = jnp.einsum("bnm,bmf->bnf", att, x) + bias
    return jnp.where(h > 0.0, h, jnp.exp(h) - 1.0)


if __name__ == "__main__":
    B, N, D = 2, 8, 32  # batch, nodes, features (in_features == out_features)
    key = jax.random.PRNGKey(0)
    kx, kadj, kw, kb = jax.random.split(key, 4)

    x = jax.random.normal(kx, (B, N, D), dtype=jnp.float32)

    # binary adjacency with self-loops
    adj = (jax.random.uniform(kadj, (B, N, N)) > 0.5).astype(jnp.float32)
    adj = jnp.maximum(adj, jnp.eye(N, dtype=jnp.float32)[None])

    # Xavier-uniform init with gain=1.414 (matches the module's parameter shapes)
    gain = 1.414
    bound_w = gain * (6.0 / (D + D)) ** 0.5
    w_a = jax.random.uniform(kw, (D, D), minval=-bound_w, maxval=bound_w,
                             dtype=jnp.float32)
    bound_b = gain * (6.0 / (1 + D)) ** 0.5
    bias = jax.random.uniform(kb, (1, D), minval=-bound_b, maxval=bound_b,
                              dtype=jnp.float32)

    out = graph_convolution(x, adj, w_a, bias)
    jax.block_until_ready(out)

    ref = _reference(x, adj, w_a, bias)
    # bf16 MXU inputs + approx EUP reciprocal give ~1e-3 absolute deviation at
    # these shapes; 2e-2 tolerance leaves comfortable margin.
    assert out.shape == ref.shape
    assert jnp.allclose(out, ref, atol=2e-2, rtol=2e-2), "mismatch vs JAX reference"

    print("KERNEL_OK")
</pallas_src>

<mosaic_0001>
module attributes {stable_mosaic.version = 11 : i64} {
  func.func @_graph_conv_kernel(%arg0: i32, %arg1: memref<2x8x128xf32, #tpu.memory_space<vmem>>, %arg2: memref<2x8x8xf32, #tpu.memory_space<vmem>>, %arg3: memref<128x128xf32, #tpu.memory_space<vmem>>, %arg4: memref<1x128xf32, #tpu.memory_space<vmem>>, %arg5: memref<2x8x128xf32, #tpu.memory_space<vmem>>) attributes {dimension_semantics = [#tpu.dimension_semantics<parallel>], iteration_bounds = array<i64: 1>, scalar_prefetch = 0 : i64, scratch_operands = 0 : i64, tpu.core_type = #tpu.core_type<tc>, window_params = [{transform_indices = @transform_0, window_bounds = array<i64: 2, 8, 128>}, {transform_indices = @transform_1, window_bounds = array<i64: 2, 8, 8>}, {pipeline_mode = #tpu.pipeline_mode<synchronous>, transform_indices = @transform_2, window_bounds = array<i64: 128, 128>}, {pipeline_mode = #tpu.pipeline_mode<synchronous>, transform_indices = @transform_3, window_bounds = array<i64: 1, 128>}, {transform_indices = @transform_4, window_bounds = array<i64: 2, 8, 128>}]} {
    %c0 = arith.constant 0 : index
    %c0_0 = arith.constant 0 : index
    %c0_1 = arith.constant 0 : index
    %0 = vector.load %arg1[%c0, %c0_0, %c0_1] : memref<2x8x128xf32, #tpu.memory_space<vmem>>, vector<2x8x128xf32>
    %1 = arith.truncf %0 : vector<2x8x128xf32> to vector<2x8x128xbf16>
    %c0_2 = arith.constant 0 : index
    %c0_3 = arith.constant 0 : index
    %2 = vector.load %arg3[%c0_2, %c0_3] : memref<128x128xf32, #tpu.memory_space<vmem>>, vector<128x128xf32>
    %3 = arith.truncf %2 : vector<128x128xf32> to vector<128x128xbf16>
    %c0_4 = arith.constant 0 : index
    %c0_5 = arith.constant 0 : index
    %c0_6 = arith.constant 0 : index
    %4 = vector.load %arg2[%c0_4, %c0_5, %c0_6] : memref<2x8x8xf32, #tpu.memory_space<vmem>>, vector<2x8x8xf32>
    %c0_7 = arith.constant 0 : index
    %c0_8 = arith.constant 0 : index
    %5 = vector.load %arg4[%c0_7, %c0_8] : memref<1x128xf32, #tpu.memory_space<vmem>>, vector<1x128xf32>
    %6 = vector.shape_cast %1 : vector<2x8x128xbf16> to vector<16x128xbf16>
    %cst = arith.constant dense<0.000000e+00> : vector<16x128xf32>
    %7 = tpu.matmul %6, %3, %cst {dimension_numbers = #tpu.dot_dimension_numbers<[1], [0], [0], [1], [0, 0, 1, 1], [], []>} : vector<16x128xbf16>, vector<128x128xbf16>, vector<16x128xf32> -> vector<16x128xf32>
    %8 = vector.shape_cast %7 : vector<16x128xf32> to vector<2x8x128xf32>
    %9 = arith.truncf %8 : vector<2x8x128xf32> to vector<2x8x128xbf16>
    %cst_9 = arith.constant dense<0.000000e+00> : vector<2x8x8xf32>
    %10 = tpu.matmul %9, %9, %cst_9 {dimension_numbers = #tpu.dot_dimension_numbers<[2], [2], [1], [1], [0, 0, 0, 1, 1, 1], [0], [0]>} : vector<2x8x128xbf16>, vector<2x8x128xbf16>, vector<2x8x8xf32> -> vector<2x8x8xf32>
    %11 = arith.mulf %10, %10 : vector<2x8x8xf32>
    %cst_10 = arith.constant dense<0.000000e+00> : vector<2x8xf32>
    %12 = vector.multi_reduction <add>, %11, %cst_10 [2] : vector<2x8x8xf32> to vector<2x8xf32>
    %13 = vector.shape_cast %12 : vector<2x8xf32> to vector<2x8x1xf32>
    %cst_11 = arith.constant 1.000000e-30 : f32
    %14 = vector.broadcast %cst_11 : f32 to vector<2x8x1xf32>
    %15 = arith.addf %13, %14 : vector<2x8x1xf32>
    %16 = math.rsqrt %15 : vector<2x8x1xf32>
    %cst_12 = arith.constant dense<0.000000e+00> : vector<2x8xf32>
    %17 = vector.multi_reduction <add>, %11, %cst_12 [1] : vector<2x8x8xf32> to vector<2x8xf32>
    %18 = vector.shape_cast %17 : vector<2x8xf32> to vector<2x1x8xf32>
    %cst_13 = arith.constant 1.000000e-30 : f32
    %19 = vector.broadcast %cst_13 : f32 to vector<2x1x8xf32>
    %20 = arith.addf %18, %19 : vector<2x1x8xf32>
    %21 = math.rsqrt %20 : vector<2x1x8xf32>
    %22 = vector.broadcast %16 : vector<2x8x1xf32> to vector<2x8x8xf32>
    %23 = arith.mulf %10, %22 : vector<2x8x8xf32>
    %24 = vector.broadcast %21 : vector<2x1x8xf32> to vector<2x8x8xf32>
    %25 = arith.mulf %23, %24 : vector<2x8x8xf32>
    %cst_14 = arith.constant -2.000000e-01 : f32
    %26 = vector.broadcast %cst_14 : f32 to vector<2x8x8xf32>
    %27 = arith.mulf %26, %25 : vector<2x8x8xf32>
    %28 = arith.maximumf %25, %27 : vector<2x8x8xf32>
    %cst_15 = arith.constant 0.000000e+00 : f32
    %29 = vector.broadcast %cst_15 : f32 to vector<2x8x8xf32>
    %30 = arith.cmpf ogt, %4, %29 : vector<2x8x8xf32>
    %cst_16 = arith.constant -9.000000e+15 : f32
    %31 = vector.broadcast %cst_16 : f32 to vector<2x8x8xf32>
    %32 = arith.select %30, %28, %31 : vector<2x8x8xi1>, vector<2x8x8xf32>
    %cst_17 = arith.constant dense<0xFF800000> : vector<2x8xf32>
    %33 = vector.multi_reduction <maximumf>, %32, %cst_17 [2] : vector<2x8x8xf32> to vector<2x8xf32>
    %34 = vector.shape_cast %33 : vector<2x8xf32> to vector<2x8x1xf32>
    %35 = vector.broadcast %34 : vector<2x8x1xf32> to vector<2x8x8xf32>
    %36 = arith.subf %32, %35 : vector<2x8x8xf32>
    %37 = math.exp %36 : vector<2x8x8xf32>
    %cst_18 = arith.constant dense<0.000000e+00> : vector<2x8xf32>
    %38 = vector.multi_reduction <add>, %37, %cst_18 [2] : vector<2x8x8xf32> to vector<2x8xf32>
    %39 = vector.shape_cast %38 : vector<2x8xf32> to vector<2x8x1xf32>
    %40 = tpu.reciprocal %39 {approx = true} : vector<2x8x1xf32> -> vector<2x8x1xf32>
    %41 = vector.broadcast %40 : vector<2x8x1xf32> to vector<2x8x8xf32>
    %42 = arith.mulf %37, %41 : vector<2x8x8xf32>
    %43 = arith.truncf %42 : vector<2x8x8xf32> to vector<2x8x8xbf16>
    %cst_19 = arith.constant dense<0.000000e+00> : vector<2x8x128xf32>
    %44 = tpu.matmul %43, %1, %cst_19 {dimension_numbers = #tpu.dot_dimension_numbers<[2], [1], [1], [2], [0, 0, 0, 1, 1, 2], [0], [0]>} : vector<2x8x8xbf16>, vector<2x8x128xbf16>, vector<2x8x128xf32> -> vector<2x8x128xf32>
    %45 = vector.shape_cast %5 : vector<1x128xf32> to vector<1x1x128xf32>
    %46 = vector.broadcast %45 : vector<1x1x128xf32> to vector<2x8x128xf32>
    %47 = arith.addf %44, %46 : vector<2x8x128xf32>
    %cst_20 = arith.constant 0.000000e+00 : f32
    %48 = vector.broadcast %cst_20 : f32 to vector<2x8x128xf32>
    %49 = arith.cmpf ogt, %47, %48 : vector<2x8x128xf32>
    %50 = math.exp %47 : vector<2x8x128xf32>
    %cst_21 = arith.constant 1.000000e+00 : f32
    %51 = vector.broadcast %cst_21 : f32 to vector<2x8x128xf32>
    %52 = arith.subf %50, %51 : vector<2x8x128xf32>
    %53 = arith.select %49, %47, %52 : vector<2x8x128xi1>, vector<2x8x128xf32>
    %c0_22 = arith.constant 0 : index
    %c0_23 = arith.constant 0 : index
    %c0_24 = arith.constant 0 : index
    %54 = vector.load %arg5[%c0_22, %c0_23, %c0_24] : memref<2x8x128xf32, #tpu.memory_space<vmem>>, vector<2x8x128xf32>
    tpu.vector_store %arg5[%c0_22, %c0_23, %c0_24], %53 {strides = array<i32>} : memref<2x8x128xf32, #tpu.memory_space<vmem>>, vector<2x8x128xf32>,
    return
  }
  func.func @transform_0(%arg0: i32) -> (i32, i32, i32) {
    %c0_i32 = arith.constant 0 : i32
    %c0_i32_0 = arith.constant 0 : i32
    %c0_i32_1 = arith.constant 0 : i32
    return %arg0, %c0_i32, %c0_i32_0 : i32, i32, i32
  }
  func.func @transform_1(%arg0: i32) -> (i32, i32, i32) {
    %c0_i32 = arith.constant 0 : i32
    %c0_i32_0 = arith.constant 0 : i32
    %c0_i32_1 = arith.constant 0 : i32
    return %arg0, %c0_i32, %c0_i32_0 : i32, i32, i32
  }
  func.func @transform_2(%arg0: i32) -> (i32, i32) {
    %c0_i32 = arith.constant 0 : i32
    %c0_i32_0 = arith.constant 0 : i32
    %c0_i32_1 = arith.constant 0 : i32
    return %c0_i32, %c0_i32_0 : i32, i32
  }
  func.func @transform_3(%arg0: i32) -> (i32, i32) {
    %c0_i32 = arith.constant 0 : i32
    %c0_i32_0 = arith.constant 0 : i32
    %c0_i32_1 = arith.constant 0 : i32
    return %c0_i32, %c0_i32_0 : i32, i32
  }
  func.func @transform_4(%arg0: i32) -> (i32, i32, i32) {
    %c0_i32 = arith.constant 0 : i32
    %c0_i32_0 = arith.constant 0 : i32
    %c0_i32_1 = arith.constant 0 : i32
    return %arg0, %c0_i32, %c0_i32_0 : i32, i32, i32
  }
}

</mosaic_0001>

<llo_original>
// kernel: tpu_custom_call.1
$region0: #{tpu_custom_call.1}
  #allocation0 [shape = 'u32[]', space=smem, size = 0x4, offset = 0x4, fixed_abs, tag = 'smem constant byte address 0x4 - core index']
  #allocation1 [shape = 'u32[144,128]{1,0:T(1,128)}', space=vmem, size = 0x12000, scoped, tag = 'internal scratch']
  %s0 = inlined_call_operand.hbm [shape: f32[2,8,128], index: 0, kind: input, shape index: {}]
  %s1 = inlined_call_operand.hbm [shape: f32[2,8,8], index: 1, kind: input, shape index: {}]
  %s2 = inlined_call_operand.hbm [shape: f32[128,128], index: 2, kind: input, shape index: {}]
  %s3 = inlined_call_operand.vmem [shape: f32[1,128], index: 3, kind: input, shape index: {}]
  %s4 = inlined_call_operand.hbm [shape: f32[2,8,128], index: 4, kind: output, shape index: {}]
  %s5 = sld [smem:[#allocation0]]
  $region38: #{tpu_custom_call.1} parent=0
    _
  %s7 = ssub.s32 1, %s5
  %s8 = scalar_select 0, %s7, %s5
  $region1: #{tpu_custom_call.1} parent=0
    #allocation2 [shape = 'u8[8192]{0}', space=vmem, size = 0x2000, scoped, tag = 'input window, operand 0, single buffered']
    #allocation3 [shape = 's32[1]{0}', space=sflag, size = 0x4, scoped, tag = 'scoped memory for tpu_custom_call.1']
    #allocation4 [shape = 's32[1]{0}', space=sflag, size = 0x4, scoped, tag = 'scoped memory for tpu_custom_call.1']
    #allocation5 [shape = 'u8[8192]{0}', space=vmem, size = 0x2000, scoped, tag = 'input window, operand 1, single buffered']
    #allocation6 [shape = 's32[1]{0}', space=sflag, size = 0x4, scoped, tag = 'scoped memory for tpu_custom_call.1']
    #allocation7 [shape = 'u8[65536]{0}', space=vmem, size = 0x10000, scoped, tag = 'input window, operand 2, single buffered']
    #allocation8 [shape = 'u8[8192]{0}', space=vmem, size = 0x2000, scoped, tag = 'output window, operand 0, single buffered']
    %9 = vsyncpa [#allocation3], 0
    %10 = vsyncpa [#allocation6], 0
    %11 = vsyncpa [#allocation4], 0
    // Predicated region
    $region2: #{tpu_custom_call.1} parent=1 // pred_check
      _
    $region3: #{tpu_custom_call.1} parent=1 // pred_check_branch
      %13 = sbr.rel (0) target = $region5
    $region4: #{tpu_custom_call.1} parent=1 // pred_region
      %s15 = ssub.s32 256, 256
      %16 = vsyncadd [#allocation3], %s15
      %s17 = sshll.u32 [#allocation2], 4
      %s18 = int_to_ptr.vmem [resolvable:$true] %s17
      %23 = dma.hbm_to_vmem [thread:$0]  %s0, 256, %s18, [#allocation3], 128, 128, 8
    $region5: #{tpu_custom_call.1} parent=1 // pred_fallthru
      _
    // Predicated region
    $region6: #{tpu_custom_call.1} parent=1 // pred_check
      _
    $region7: #{tpu_custom_call.1} parent=1 // pred_check_branch
      %25 = sbr.rel (0) target = $region9
    $region8: #{tpu_custom_call.1} parent=1 // pred_region
      %s27 = ssub.s32 256, 256
      %28 = vsyncadd [#allocation6], %s27
      %s29 = sshll.u32 [#allocation5], 4
      %s30 = int_to_ptr.vmem [resolvable:$true] %s29
      %35 = dma.hbm_to_vmem [thread:$0]  %s1, 256, %s30, [#allocation6], 128, 128, 8
    $region9: #{tpu_custom_call.1} parent=1 // pred_fallthru
      _
    // Predicated region
    $region10: #{tpu_custom_call.1} parent=1 // pred_check
      _
    $region11: #{tpu_custom_call.1} parent=1 // pred_check_branch
      %37 = sbr.rel (0) target = $region13
    $region12: #{tpu_custom_call.1} parent=1 // pred_region
      %s39 = ssub.s32 2048, 2048
      %40 = vsyncadd [#allocation6], %s39
      %s41 = sshll.u32 [#allocation7], 4
      %s42 = int_to_ptr.vmem [resolvable:$true] %s41
      %47 = dma.hbm_to_vmem [thread:$0]  %s2, 2048, %s42, [#allocation6], 128, 128, 8
    $region13: #{tpu_custom_call.1} parent=1 // pred_fallthru
      _
    // Predicated region
    $region14: #{tpu_custom_call.1} parent=1 // pred_check
      _
    $region15: #{tpu_custom_call.1} parent=1 // pred_check_branch
      %49 = sbr.rel (0) target = $region17
    $region16: #{tpu_custom_call.1} parent=1 // pred_region
      _
    $region17: #{tpu_custom_call.1} parent=1 // pred_fallthru
      _
    // Predicated region
    $region18: #{tpu_custom_call.1} parent=1 // pred_check
      _
    $region19: #{tpu_custom_call.1} parent=1 // pred_check_branch
      %51 = sbr.rel (0) target = $region21
    $region20: #{tpu_custom_call.1} parent=1 // pred_region
      %52 = dma.done [#allocation3], 256
    $region21: #{tpu_custom_call.1} parent=1 // pred_fallthru
      _
    // Predicated region
    $region22: #{tpu_custom_call.1} parent=1 // pred_check
      _
    $region23: #{tpu_custom_call.1} parent=1 // pred_check_branch
      %54 = sbr.rel (0) target = $region25
    $region24: #{tpu_custom_call.1} parent=1 // pred_region
      %55 = dma.done [#allocation6], 256
    $region25: #{tpu_custom_call.1} parent=1 // pred_fallthru
      _
    // Predicated region
    $region26: #{tpu_custom_call.1} parent=1 // pred_check
      _
    $region27: #{tpu_custom_call.1} parent=1 // pred_check_branch
      %57 = sbr.rel (0) target = $region29
    $region28: #{tpu_custom_call.1} parent=1 // pred_region
      %58 = dma.done [#allocation6], 2048
    $region29: #{tpu_custom_call.1} parent=1 // pred_fallthru
      _
    %v60 = vld [vmem:[#allocation2] sm:$0xff]
    %v61 = vld [vmem:[#allocation2 + $0x8] sm:$0xff]
    %v62 = vpack.c.bf16 %v60, %v60
    %v63 = vpack.c.bf16 %v61, %v61
    %v64 = vld [vmem:[#allocation7] sm:$0xff]
    %v65 = vld [vmem:[#allocation7 + $0x8] sm:$0xff]
    %v66 = vld [vmem:[#allocation7 + $0x10] sm:$0xff]
    %v67 = vld [vmem:[#allocation7 + $0x18] sm:$0xff]
    %v68 = vld [vmem:[#allocation7 + $0x20] sm:$0xff]
    %v69 = vld [vmem:[#allocation7 + $0x28] sm:$0xff]
    %v70 = vld [vmem:[#allocation7 + $0x30] sm:$0xff]
    %v71 = vld [vmem:[#allocation7 + $0x38] sm:$0xff]
    %v72 = vld [vmem:[#allocation7 + $0x40] sm:$0xff]
    %v73 = vld [vmem:[#allocation7 + $0x48] sm:$0xff]
    %v74 = vld [vmem:[#allocation7 + $0x50] sm:$0xff]
    %v75 = vld [vmem:[#allocation7 + $0x58] sm:$0xff]
    %v76 = vld [vmem:[#allocation7 + $0x60] sm:$0xff]
    %v77 = vld [vmem:[#allocation7 + $0x68] sm:$0xff]
    %v78 = vld [vmem:[#allocation7 + $0x70] sm:$0xff]
    %v79 = vld [vmem:[#allocation7 + $0x78] sm:$0xff]
    %v80 = vpack.c.bf16 %v65, %v64
    %v81 = vpack.c.bf16 %v67, %v66
    %v82 = vpack.c.bf16 %v69, %v68
    %v83 = vpack.c.bf16 %v71, %v70
    %v84 = vpack.c.bf16 %v73, %v72
    %v85 = vpack.c.bf16 %v75, %v74
    %v86 = vpack.c.bf16 %v77, %v76
    %v87 = vpack.c.bf16 %v79, %v78
    %v88 = vld [vmem:[#allocation5] sm:$0xff]
    %v89 = vld [vmem:[#allocation5 + $0x8] sm:$0xff]
    %v90 = vld [vmem:[%s3] sm:$0x1]
    %v93 = vunpack.c.l.b16 %v62
    %v94 = vunpack.c.l.b16 %v63
    %v95 = vpack.c.b16 %v94, %v93
    %97 = vmatprep.subr.bf16.mxu0 0
    %98 = vmatpush1.bf16.msra.mxu0 %v87
    %99 = vmatprep.subr.bf16.mxu0 0
    %100 = vmatpush1.bf16.msra.mxu0 %v86
    %101 = vmatprep.subr.bf16.mxu0 0
    %102 = vmatpush1.bf16.msra.mxu0 %v85
    %103 = vmatprep.subr.bf16.mxu0 0
    %104 = vmatpush1.bf16.msra.mxu0 %v84
    %105 = vmatprep.subr.bf16.mxu0 0
    %106 = vmatpush1.bf16.msra.mxu0 %v83
    %107 = vmatprep.subr.bf16.mxu0 0
    %108 = vmatpush1.bf16.msra.mxu0 %v82
    %109 = vmatprep.subr.bf16.mxu0 0
    %110 = vmatpush1.bf16.msra.mxu0 %v81
    %111 = vmatprep.subr.bf16.mxu0 0
    %112 = vmatpush1.bf16.msra.mxu0 %v80
    %113 = vmatprep.subr.bf16.mxu0 0
    %114 = vmatpush2.bf16.msra.mxu0 0
    %115 = vmatprep.subr.bf16.mxu0 0
    %116 = vmatpush2.bf16.msra.mxu0 0
    %117 = vmatprep.subr.bf16.mxu0 0
    %118 = vmatpush2.bf16.msra.mxu0 0
    %119 = vmatprep.subr.bf16.mxu0 0
    %120 = vmatpush2.bf16.msra.mxu0 0
    %121 = vmatprep.subr.bf16.mxu0 0
    %122 = vmatpush2.bf16.msra.mxu0 0
    %123 = vmatprep.subr.bf16.mxu0 0
    %124 = vmatpush2.bf16.msra.mxu0 0
    %125 = vmatprep.subr.bf16.mxu0 0
    %126 = vmatpush2.bf16.msra.mxu0 0
    %127 = vmatprep.subr.bf16.mxu0 0
    %128 = vmatpush2.bf16.msra.mxu0 0
    %129 = vmatprep.mubr.bf16.mxu0 0
    %130 = vmatmul.mubr.bf16.gmra.mxu0 %v95
    %v131 = vpop.f32.mrf.mxu0
    %v132 = vadd.f32 0.0, %v131
    %v133 = vpop.f32.mrf.mxu0
    %v134 = vpop.f32.mrf.mxu0
    %v135 = vadd.f32 0.0, %v134
    %v136 = vpop.f32.mrf.mxu0
    %137 = vdwg.mxu0
    %v138 = vpack.c.bf16 %v132, %v132
    %v139 = vpack.c.bf16 %v135, %v135
    %140 = vmatprep.subr.bf16.mxu0 0
    %141 = vmatpush1.bf16.xpose.msra.mxu0 0
    %142 = vmatprep.subr.bf16.mxu0 0
    %143 = vmatpush1.bf16.xpose.msra.mxu0 0
    %144 = vmatprep.subr.bf16.mxu0 0
    %145 = vmatpush1.bf16.xpose.msra.mxu0 0
    %146 = vmatprep.subr.bf16.mxu0 0
    %147 = vmatpush1.bf16.xpose.msra.mxu0 0
    %148 = vmatprep.subr.bf16.mxu0 0
    %149 = vmatpush1.bf16.xpose.msra.mxu0 0
    %150 = vmatprep.subr.bf16.mxu0 0
    %151 = vmatpush1.bf16.xpose.msra.mxu0 0
    %152 = vmatprep.subr.bf16.mxu0 0
    %153 = vmatpush1.bf16.xpose.msra.mxu0 0
    %154 = vmatprep.subr.bf16.mxu0 0
    %155 = vmatpush1.bf16.xpose.msra.mxu0 %v138
    %156 = vmatprep.subr.bf16.mxu0 0
    %157 = vmatpush2.bf16.xpose.msra.mxu0 0
    %158 = vmatprep.subr.bf16.mxu0 0
    %159 = vmatpush2.bf16.xpose.msra.mxu0 0
    %160 = vmatprep.subr.bf16.mxu0 0
    %161 = vmatpush2.bf16.xpose.msra.mxu0 0
    %162 = vmatprep.subr.bf16.mxu0 0
    %163 = vmatpush2.bf16.xpose.msra.mxu0 0
    %164 = vmatprep.subr.bf16.mxu0 0
    %165 = vmatpush2.bf16.xpose.msra.mxu0 0
    %166 = vmatprep.subr.bf16.mxu0 0
    %167 = vmatpush2.bf16.xpose.msra.mxu0 0
    %168 = vmatprep.subr.bf16.mxu0 0
    %169 = vmatpush2.bf16.xpose.msra.mxu0 0
    %170 = vmatprep.subr.bf16.mxu0 0
    %171 = vmatpush2.bf16.xpose.msra.mxu0 0
    %172 = vmatprep.mubr.bf16.mxu0 0
    %173 = vmatmul.mubr.bf16.gmra.mxu0 %v138
    %v174 = vpop.f32.mrf.mxu0
    %v175 = vadd.f32 0.0, %v174
    %v176 = vpop.f32.mrf.mxu0
    %v177 = vpop.f32.mrf.mxu0
    %v178 = vpop.f32.mrf.mxu0
    %179 = vdwg.mxu0
    %180 = vmatprep.subr.bf16.mxu0 0
    %181 = vmatpush1.bf16.xpose.msra.mxu0 0
    %182 = vmatprep.subr.bf16.mxu0 0
    %183 = vmatpush1.bf16.xpose.msra.mxu0 0
    %184 = vmatprep.subr.bf16.mxu0 0
    %185 = vmatpush1.bf16.xpose.msra.mxu0 0
    %186 = vmatprep.subr.bf16.mxu0 0
    %187 = vmatpush1.bf16.xpose.msra.mxu0 0
    %188 = vmatprep.subr.bf16.mxu0 0
    %189 = vmatpush1.bf16.xpose.msra.mxu0 0
    %190 = vmatprep.subr.bf16.mxu0 0
    %191 = vmatpush1.bf16.xpose.msra.mxu0 0
    %192 = vmatprep.subr.bf16.mxu0 0
    %193 = vmatpush1.bf16.xpose.msra.mxu0 0
    %194 = vmatprep.subr.bf16.mxu0 0
    %195 = vmatpush1.bf16.xpose.msra.mxu0 %v139
    %196 = vmatprep.subr.bf16.mxu0 0
    %197 = vmatpush2.bf16.xpose.msra.mxu0 0
    %198 = vmatprep.subr.bf16.mxu0 0
    %199 = vmatpush2.bf16.xpose.msra.mxu0 0
    %200 = vmatprep.subr.bf16.mxu0 0
    %201 = vmatpush2.bf16.xpose.msra.mxu0 0
    %202 = vmatprep.subr.bf16.mxu0 0
    %203 = vmatpush2.bf16.xpose.msra.mxu0 0
    %204 = vmatprep.subr.bf16.mxu0 0
    %205 = vmatpush2.bf16.xpose.msra.mxu0 0
    %206 = vmatprep.subr.bf16.mxu0 0
    %207 = vmatpush2.bf16.xpose.msra.mxu0 0
    %208 = vmatprep.subr.bf16.mxu0 0
    %209 = vmatpush2.bf16.xpose.msra.mxu0 0
    %210 = vmatprep.subr.bf16.mxu0 0
    %211 = vmatpush2.bf16.xpose.msra.mxu0 0
    %212 = vmatprep.mubr.bf16.mxu0 0
    %213 = vmatmul.mubr.bf16.gmra.mxu0 %v139
    %v214 = vpop.f32.mrf.mxu0
    %v215 = vadd.f32 0.0, %v214
    %v216 = vpop.f32.mrf.mxu0
    %v217 = vpop.f32.mrf.mxu0
    %v218 = vpop.f32.mrf.mxu0
    %219 = vdwg.mxu0
    %v220 = vmul.f32 %v175, %v175
    %v221 = vmul.f32 %v215, %v215
    %vm222 = vcmask 64512
    %v223 = vsel %vm222, %v220, 0.0
    %224 = vadd.xlane.f32.xlu0 %v223
    %v225 = vpop.xlane.xlu0 %224
    %v226 = vsel %vm222, %v221, 0.0
    %227 = vadd.xlane.f32.xlu0 %v226
    %v228 = vpop.xlane.xlu0 %227
    %v229 = vadd.f32 %v225, 1e-30
    %v230 = vadd.f32 %v228, 1e-30
    %v231 = vrsqrt.pop %v229
    %v232 = vrsqrt.pop %v230
    %v233 = vrot.slane %v223, 4
    %v234 = vadd.f32 %v223, %v233
    %v235 = vrot.slane %v234, 2
    %v236 = vadd.f32 %v234, %v235
    %v237 = vrot.slane %v236, 1
    %v238 = vadd.f32 %v236, %v237
    %v239 = vrot.slane %v226, 4
    %v240 = vadd.f32 %v226, %v239
    %v241 = vrot.slane %v240, 2
    %v242 = vadd.f32 %v240, %v241
    %v243 = vrot.slane %v242, 1
    %v244 = vadd.f32 %v242, %v243
    %v245 = vadd.f32 %v238, 1e-30
    %v246 = vadd.f32 %v244, 1e-30
    %v247 = vrsqrt.pop %v245
    %v248 = vrsqrt.pop %v246
    %v249 = vmul.f32 %v175, %v231
    %v250 = vmul.f32 %v215, %v232
    %v251 = vmul.f32 %v249, %v247
    %v252 = vmul.f32 %v250, %v248
    %v253 = vmul.f32 %v251, -0.2
    %v254 = vmul.f32 %v252, -0.2
    %v255 = vmax.f32 %v251, %v253
    %v256 = vmax.f32 %v252, %v254
    %vm257 = vcmp.gt.f32.partialorder %v88, 0.0
    %vm258 = vcmp.gt.f32.partialorder %v89, 0.0
    %v259 = vsel %vm257, %v255, -9e+15
    %v260 = vsel %vm258, %v256, -9e+15
    %v261 = vsel %vm222, %v259, -inf
    %262 = vmax.xlane.f32.xlu0 %v261
    %v263 = vpop.xlane.xlu0 %262
    %v264 = vsel %vm222, %v260, -inf
    %265 = vmax.xlane.f32.xlu0 %v264
    %v266 = vpop.xlane.xlu0 %265
    %v267 = vsub.f32 %v259, %v263
    %v268 = vsub.f32 %v260, %v266
    %v269 = vmul.f32 %v267, 1.442695
    %v270 = vpow.pop %v269
    %v271 = vmul.f32 %v268, 1.442695
    %v272 = vpow.pop %v271
    %v273 = vsel %vm222, %v270, 0.0
    %274 = vadd.xlane.f32.xlu0 %v273
    %v275 = vpop.xlane.xlu0 %274
    %v276 = vsel %vm222, %v272, 0.0
    %277 = vadd.xlane.f32.xlu0 %v276
    %v278 = vpop.xlane.xlu0 %277
    %v279 = vrcp.pop %v275
    %v280 = vrcp.pop %v278
    %v281 = vmul.f32 %v270, %v279
    %v282 = vmul.f32 %v272, %v280
    %v283 = vpack.c.bf16 %v281, %v281
    %v284 = vpack.c.bf16 %v282, %v282
    %v286 = vlaneseq
    %v287 = vshrl.u32 %v286, 7
    %v288 = vsub.s32 0, %v287
    %v289 = vrot.slane %v90, %v288
    %v292 = vsel %vm222, %v283, 0
    %vm294 = vcmask 1043456
    %v296 = vsel %vm294, %v62, 0
    %298 = vmatprep.subr.bf16.mxu0 0
    %299 = vmatpush1.bf16.msra.mxu0 0
    %300 = vmatprep.subr.bf16.mxu0 0
    %301 = vmatpush1.bf16.msra.mxu0 0
    %302 = vmatprep.subr.bf16.mxu0 0
    %303 = vmatpush1.bf16.msra.mxu0 0
    %304 = vmatprep.subr.bf16.mxu0 0
    %305 = vmatpush1.bf16.msra.mxu0 0
    %306 = vmatprep.subr.bf16.mxu0 0
    %307 = vmatpush1.bf16.msra.mxu0 0
    %308 = vmatprep.subr.bf16.mxu0 0
    %309 = vmatpush1.bf16.msra.mxu0 0
    %310 = vmatprep.subr.bf16.mxu0 0
    %311 = vmatpush1.bf16.msra.mxu0 0
    %312 = vmatprep.subr.bf16.mxu0 0
    %313 = vmatpush1.bf16.msra.mxu0 %v296
    %314 = vmatprep.subr.bf16.mxu0 0
    %315 = vmatpush2.bf16.msra.mxu0 0
    %316 = vmatprep.subr.bf16.mxu0 0
    %317 = vmatpush2.bf16.msra.mxu0 0
    %318 = vmatprep.subr.bf16.mxu0 0
    %319 = vmatpush2.bf16.msra.mxu0 0
    %320 = vmatprep.subr.bf16.mxu0 0
    %321 = vmatpush2.bf16.msra.mxu0 0
    %322 = vmatprep.subr.bf16.mxu0 0
    %323 = vmatpush2.bf16.msra.mxu0 0
    %324 = vmatprep.subr.bf16.mxu0 0
    %325 = vmatpush2.bf16.msra.mxu0 0
    %326 = vmatprep.subr.bf16.mxu0 0
    %327 = vmatpush2.bf16.msra.mxu0 0
    %328 = vmatprep.subr.bf16.mxu0 0
    %329 = vmatpush2.bf16.msra.mxu0 0
    %330 = vmatprep.mubr.bf16.mxu0 0
    %331 = vmatmul.mubr.bf16.gmra.mxu0 %v292
    %v332 = vpop.f32.mrf.mxu0
    %v333 = vadd.f32 %v289, %v332
    %v334 = vpop.f32.mrf.mxu0
    %v335 = vpop.f32.mrf.mxu0
    %v336 = vpop.f32.mrf.mxu0
    %337 = vdwg.mxu0
    %v339 = vsel %vm222, %v284, 0
    %v342 = vsel %vm294, %v63, 0
    %344 = vmatprep.subr.bf16.mxu0 0
    %345 = vmatpush1.bf16.msra.mxu0 0
    %346 = vmatprep.subr.bf16.mxu0 0
    %347 = vmatpush1.bf16.msra.mxu0 0
    %348 = vmatprep.subr.bf16.mxu0 0
    %349 = vmatpush1.bf16.msra.mxu0 0
    %350 = vmatprep.subr.bf16.mxu0 0
    %351 = vmatpush1.bf16.msra.mxu0 0
    %352 = vmatprep.subr.bf16.mxu0 0
    %353 = vmatpush1.bf16.msra.mxu0 0
    %354 = vmatprep.subr.bf16.mxu0 0
    %355 = vmatpush1.bf16.msra.mxu0 0
    %356 = vmatprep.subr.bf16.mxu0 0
    %357 = vmatpush1.bf16.msra.mxu0 0
    %358 = vmatprep.subr.bf16.mxu0 0
    %359 = vmatpush1.bf16.msra.mxu0 %v342
    %360 = vmatprep.subr.bf16.mxu0 0
    %361 = vmatpush2.bf16.msra.mxu0 0
    %362 = vmatprep.subr.bf16.mxu0 0
    %363 = vmatpush2.bf16.msra.mxu0 0
    %364 = vmatprep.subr.bf16.mxu0 0
    %365 = vmatpush2.bf16.msra.mxu0 0
    %366 = vmatprep.subr.bf16.mxu0 0
    %367 = vmatpush2.bf16.msra.mxu0 0
    %368 = vmatprep.subr.bf16.mxu0 0
    %369 = vmatpush2.bf16.msra.mxu0 0
    %370 = vmatprep.subr.bf16.mxu0 0
    %371 = vmatpush2.bf16.msra.mxu0 0
    %372 = vmatprep.subr.bf16.mxu0 0
    %373 = vmatpush2.bf16.msra.mxu0 0
    %374 = vmatprep.subr.bf16.mxu0 0
    %375 = vmatpush2.bf16.msra.mxu0 0
    %376 = vmatprep.mubr.bf16.mxu0 0
    %377 = vmatmul.mubr.bf16.gmra.mxu0 %v339
    %v378 = vpop.f32.mrf.mxu0
    %v379 = vadd.f32 %v289, %v378
    %v380 = vpop.f32.mrf.mxu0
    %v381 = vpop.f32.mrf.mxu0
    %v382 = vpop.f32.mrf.mxu0
    %383 = vdwg.mxu0
    %vm384 = vcmp.gt.f32.partialorder %v333, 0.0
    %vm385 = vcmp.gt.f32.partialorder %v379, 0.0
    %v386 = vmul.f32 %v333, 1.442695
    %v387 = vpow.pop %v386
    %v388 = vmul.f32 %v379, 1.442695
    %v389 = vpow.pop %v388
    %v390 = vsub.f32 %v387, 1.0
    %v391 = vsub.f32 %v389, 1.0
    %v392 = vsel %vm384, %v333, %v390
    %v393 = vsel %vm385, %v379, %v391
    %394 = vst [vmem:[#allocation8] sm:$0xff] %v392
    %395 = vst [vmem:[#allocation8 + $0x8] sm:$0xff] %v393
    // Predicated region
    $region30: #{tpu_custom_call.1} parent=1 // pred_check
      _
    $region31: #{tpu_custom_call.1} parent=1 // pred_check_branch
      %397 = sbr.rel (0) target = $region33
    $region32: #{tpu_custom_call.1} parent=1 // pred_region
      %s399 = ssub.s32 256, 256
      %400 = vsyncadd [#allocation4], %s399
      %s401 = sshll.u32 [#allocation8], 4
      %s402 = int_to_ptr.vmem [resolvable:$true] %s401
      %407 = dma.vmem_to_hbm [thread:$0]  %s402, 256, %s4, [#allocation4], 128, 128, 8
    $region33: #{tpu_custom_call.1} parent=1 // pred_fallthru
      _
    // Predicated region
    $region34: #{tpu_custom_call.1} parent=1 // pred_check
      _
    $region35: #{tpu_custom_call.1} parent=1 // pred_check_branch
      %409 = sbr.rel (0) target = $region37
    $region36: #{tpu_custom_call.1} parent=1 // pred_region
      %410 = dma.done [#allocation4], 256
    $region37: #{tpu_custom_call.1} parent=1 // pred_fallthru
      _
    %411 = vsyncpa [#allocation3], 1
    %412 = vsyncpa [#allocation6], 1
    %413 = vsyncpa [#allocation4], 1

</llo_original>
